<compile_context>
chip_gen: v6e
topology: v6e:2x2x1
jax: 0.10.0
libtpu: 0.0.40
codegen_flags: <defaults>
</compile_context>

<pallas_src>
import jax
import jax.numpy as jnp
from jax.experimental import pallas as pl
from jax.experimental.pallas import tpu as pltpu

# ---- static configuration (mirrors MFH __init__ kwargs) ----
ORDER = 2
POOL = 2
HIDDEN = 32            # hidden_sizes = [32, 32] (equal across orders, required for the product)
D_IMG = 16
D_Q = 24
B = 2
L = 8                  # num locations
BL = B * L
HP = HIDDEN // POOL    # per-order pooled dim
OUT_DIM = ORDER * HP   # = sum(hidden_sizes) / pool_size
OH = ORDER * HIDDEN    # concatenated hidden dim across orders


def mfh_kernel(img_ref, q_ref, wi_ref, bi_ref, wq_ref, bq_ref,
               pool_ref, osum_ref, obro_ref, expand_ref, seg_ref, out_ref):
    """Single invocation processing all B*L rows.

    img_ref    : (BL, D_IMG)           flattened image features
    q_ref      : (B, D_Q)              question embeddings
    wi_ref     : (D_IMG, OH)           concatenated image-linear weights (all orders)
    bi_ref     : (1, OH)               concatenated image-linear biases
    wq_ref     : (D_Q, OH)             concatenated question-linear weights
    bq_ref     : (1, OH)               concatenated question-linear biases
    pool_ref   : (OH, OUT_DIM)         block-diagonal sum-pooling matrix
    osum_ref   : (OUT_DIM, ORDER)      lane -> order reduction matrix
    obro_ref   : (ORDER, OUT_DIM)      order -> lane broadcast matrix
    expand_ref : (BL, B)               batch -> row broadcast matrix
    seg_ref    : (B, BL)               row -> batch reduction matrix
    out_ref    : (BL, OUT_DIM)
    """
    img = img_ref[...]                                   # (BL, D_IMG) f32
    q = q_ref[...]                                       # (B, D_Q)    f32

    # Fused linear projections for all orders: one MXU matmul each.
    img1 = jnp.dot(img, wi_ref[...], preferred_element_type=jnp.float32) + bi_ref[...]   # (BL, OH)
    ques1 = jnp.dot(q, wq_ref[...], preferred_element_type=jnp.float32) + bq_ref[...]    # (B, OH)
    # Broadcast each batch's question projection over its L locations (segment matmul).
    ques1_rows = jnp.dot(expand_ref[...], ques1, preferred_element_type=jnp.float32)     # (BL, OH)

    # MfbExpand joint features for both orders, then high-order chaining z1 *= z0.
    z_all = img1 * ques1_rows                            # (BL, OH) = [order0 | order1]
    z0 = z_all[:, :HIDDEN]
    z1 = z0 * z_all[:, HIDDEN:]
    z_chain = jnp.concatenate([z0, z1], axis=-1)         # (BL, OH)

    # mfb_squeeze sum-pool over groups of POOL lanes (block-diagonal pooling matmul).
    pooled = jnp.dot(z_chain, pool_ref[...], preferred_element_type=jnp.float32)         # (BL, OUT_DIM)

    # Signed sqrt: sqrt(relu(x)) - sqrt(relu(-x))  ==  sign(x) * sqrt(|x|)   (one EUP sqrt).
    sa = jnp.sqrt(jnp.abs(pooled))
    sqrt_s = jnp.where(pooled < 0.0, -sa, sa)

    # Per-(batch, order) L2 normalization over the flattened (L*HP) features of each order:
    #   rows -> per-row/per-order sums -> per-batch sums -> rsqrt -> broadcast back.
    rowsq = jnp.dot(sqrt_s * sqrt_s, osum_ref[...], preferred_element_type=jnp.float32)  # (BL, ORDER)
    batch_sq = jnp.dot(seg_ref[...], rowsq, preferred_element_type=jnp.float32)          # (B, ORDER)
    inv = jax.lax.rsqrt(jnp.maximum(batch_sq, 1e-24))    # == 1 / max(||.||_2, 1e-12)
    inv_rows = jnp.dot(expand_ref[...], inv, preferred_element_type=jnp.float32)         # (BL, ORDER)
    scale = jnp.dot(inv_rows, obro_ref[...], preferred_element_type=jnp.float32)         # (BL, OUT_DIM)

    # Single store of the whole result.
    out_ref[...] = (sqrt_s * scale).astype(out_ref.dtype)


def mfh_pallas(image_feat, question_embed, w_img, b_img, w_q, b_q):
    """image_feat (B, L, D_IMG), question_embed (B, D_Q); per-order params stacked on axis 0."""
    img2d = image_feat.reshape(BL, D_IMG)

    # Pre-concatenate the per-order Linear parameters -> single fused matmuls in-kernel.
    w_img_cat = jnp.concatenate([w_img[i] for i in range(ORDER)], axis=-1)   # (D_IMG, OH)
    b_img_cat = b_img.reshape(1, OH)
    w_q_cat = jnp.concatenate([w_q[i] for i in range(ORDER)], axis=-1)       # (D_Q, OH)
    b_q_cat = b_q.reshape(1, OH)

    # Constant 0/1 helper matrices (hoisted out of the kernel; DMA'd once).
    src = jnp.arange(OH)
    dst = (src // HIDDEN) * HP + (src % HIDDEN) // POOL
    pool_mat = (dst[:, None] == jnp.arange(OUT_DIM)[None, :]).astype(jnp.float32)        # (OH, OUT_DIM)
    osum_mat = (jnp.arange(OUT_DIM)[:, None] // HP
                == jnp.arange(ORDER)[None, :]).astype(jnp.float32)                       # (OUT_DIM, ORDER)
    obro_mat = osum_mat.T                                                                # (ORDER, OUT_DIM)
    expand_mat = (jnp.arange(BL)[:, None] // L
                  == jnp.arange(B)[None, :]).astype(jnp.float32)                         # (BL, B)
    seg_mat = expand_mat.T                                                               # (B, BL)

    out2d = pl.pallas_call(
        mfh_kernel,
        out_shape=jax.ShapeDtypeStruct((BL, OUT_DIM), jnp.float32),
        grid_spec=pltpu.PrefetchScalarGridSpec(
            num_scalar_prefetch=0,
            grid=(1,),   # single step: the whole problem fits trivially in VMEM
            in_specs=[
                pl.BlockSpec((BL, D_IMG), lambda i: (0, 0)),
                pl.BlockSpec((B, D_Q), lambda i: (0, 0)),
                pl.BlockSpec((D_IMG, OH), lambda i: (0, 0)),
                pl.BlockSpec((1, OH), lambda i: (0, 0)),
                pl.BlockSpec((D_Q, OH), lambda i: (0, 0)),
                pl.BlockSpec((1, OH), lambda i: (0, 0)),
                pl.BlockSpec((OH, OUT_DIM), lambda i: (0, 0)),
                pl.BlockSpec((OUT_DIM, ORDER), lambda i: (0, 0)),
                pl.BlockSpec((ORDER, OUT_DIM), lambda i: (0, 0)),
                pl.BlockSpec((BL, B), lambda i: (0, 0)),
                pl.BlockSpec((B, BL), lambda i: (0, 0)),
            ],
            out_specs=pl.BlockSpec((BL, OUT_DIM), lambda i: (0, 0)),
        ),
        # Single micro-step: keep it on one TensorCore (no cross-core sharding of sub-µs work).
        compiler_params=pltpu.CompilerParams(dimension_semantics=("arbitrary",)),
    )(img2d, question_embed, w_img_cat, b_img_cat, w_q_cat, b_q_cat,
      pool_mat, osum_mat, obro_mat, expand_mat, seg_mat)

    return out2d.reshape(B, L, OUT_DIM)


def mfh_reference(image_feat, question_embed, w_img, b_img, w_q, b_q):
    """Pure-JAX reference reproducing the PyTorch forward semantics."""
    feats = []
    prev = None
    for i in range(ORDER):
        img1 = image_feat @ w_img[i] + b_img[i, 0]
        q1 = question_embed @ w_q[i] + b_q[i, 0]
        z = img1 * q1[:, None, :]
        if prev is not None:
            z = prev * z
        prev = z
        pooled = z.reshape(B, L, HP, POOL).sum(-1)
        ss = jnp.sqrt(jnp.maximum(pooled, 0.0)) - jnp.sqrt(jnp.maximum(-pooled, 0.0))
        flat = ss.reshape(B, -1)
        norm = jnp.sqrt(jnp.sum(flat * flat, axis=1, keepdims=True))
        flat = flat / jnp.maximum(norm, 1e-12)
        feats.append(flat.reshape(B, L, HP))
    return jnp.concatenate(feats, axis=-1)


if __name__ == "__main__":
    key = jax.random.PRNGKey(0)
    k_img, k_q, k_wi, k_bi, k_wq, k_bq = jax.random.split(key, 6)

    image_feat = jax.random.normal(k_img, (B, L, D_IMG), dtype=jnp.float32)
    question_embed = jax.random.normal(k_q, (B, D_Q), dtype=jnp.float32)

    # Deterministic synthetic parameters (Linear weights stored as (in, out)).
    w_img = jax.random.normal(k_wi, (ORDER, D_IMG, HIDDEN), dtype=jnp.float32) * 0.1
    b_img = jax.random.normal(k_bi, (ORDER, 1, HIDDEN), dtype=jnp.float32) * 0.1
    w_q = jax.random.normal(k_wq, (ORDER, D_Q, HIDDEN), dtype=jnp.float32) * 0.1
    b_q = jax.random.normal(k_bq, (ORDER, 1, HIDDEN), dtype=jnp.float32) * 0.1

    out = mfh_pallas(image_feat, question_embed, w_img, b_img, w_q, b_q)
    jax.block_until_ready(out)

    ref = mfh_reference(image_feat, question_embed, w_img, b_img, w_q, b_q)
    assert out.shape == (B, L, OUT_DIM)
    assert jnp.allclose(out, ref, atol=1e-5, rtol=1e-5), "Pallas output mismatch vs reference"

    print("KERNEL_OK")
</pallas_src>

<mosaic_0001>
module attributes {stable_mosaic.version = 11 : i64} {
  func.func @mfh_kernel(%arg0: i32, %arg1: memref<16x16xf32, #tpu.memory_space<vmem>>, %arg2: memref<2x24xf32, #tpu.memory_space<vmem>>, %arg3: memref<16x64xf32, #tpu.memory_space<vmem>>, %arg4: memref<1x64xf32, #tpu.memory_space<vmem>>, %arg5: memref<24x64xf32, #tpu.memory_space<vmem>>, %arg6: memref<1x64xf32, #tpu.memory_space<vmem>>, %arg7: memref<64x32xf32, #tpu.memory_space<vmem>>, %arg8: memref<32x2xf32, #tpu.memory_space<vmem>>, %arg9: memref<2x32xf32, #tpu.memory_space<vmem>>, %arg10: memref<16x2xf32, #tpu.memory_space<vmem>>, %arg11: memref<2x16xf32, #tpu.memory_space<vmem>>, %arg12: memref<16x32xf32, #tpu.memory_space<vmem>>) attributes {dimension_semantics = [#tpu.dimension_semantics<arbitrary>], iteration_bounds = array<i64: 1>, scalar_prefetch = 0 : i64, scratch_operands = 0 : i64, tpu.core_type = #tpu.core_type<tc>, window_params = [{pipeline_mode = #tpu.pipeline_mode<synchronous>, transform_indices = @transform_0, window_bounds = array<i64: 16, 16>}, {pipeline_mode = #tpu.pipeline_mode<synchronous>, transform_indices = @transform_1, window_bounds = array<i64: 2, 24>}, {pipeline_mode = #tpu.pipeline_mode<synchronous>, transform_indices = @transform_2, window_bounds = array<i64: 16, 64>}, {pipeline_mode = #tpu.pipeline_mode<synchronous>, transform_indices = @transform_3, window_bounds = array<i64: 1, 64>}, {pipeline_mode = #tpu.pipeline_mode<synchronous>, transform_indices = @transform_4, window_bounds = array<i64: 24, 64>}, {pipeline_mode = #tpu.pipeline_mode<synchronous>, transform_indices = @transform_5, window_bounds = array<i64: 1, 64>}, {pipeline_mode = #tpu.pipeline_mode<synchronous>, transform_indices = @transform_6, window_bounds = array<i64: 64, 32>}, {pipeline_mode = #tpu.pipeline_mode<synchronous>, transform_indices = @transform_7, window_bounds = array<i64: 32, 2>}, {pipeline_mode = #tpu.pipeline_mode<synchronous>, transform_indices = @transform_8, window_bounds = array<i64: 2, 32>}, {pipeline_mode = #tpu.pipeline_mode<synchronous>, transform_indices = @transform_9, window_bounds = array<i64: 16, 2>}, {pipeline_mode = #tpu.pipeline_mode<synchronous>, transform_indices = @transform_10, window_bounds = array<i64: 2, 16>}, {pipeline_mode = #tpu.pipeline_mode<synchronous>, transform_indices = @transform_11, window_bounds = array<i64: 16, 32>}]} {
    %c0 = arith.constant 0 : index
    %c0_0 = arith.constant 0 : index
    %0 = vector.load %arg1[%c0, %c0_0] : memref<16x16xf32, #tpu.memory_space<vmem>>, vector<16x16xf32>
    %c0_1 = arith.constant 0 : index
    %c0_2 = arith.constant 0 : index
    %1 = vector.load %arg2[%c0_1, %c0_2] : memref<2x24xf32, #tpu.memory_space<vmem>>, vector<2x24xf32>
    %c0_3 = arith.constant 0 : index
    %c0_4 = arith.constant 0 : index
    %2 = vector.load %arg3[%c0_3, %c0_4] : memref<16x64xf32, #tpu.memory_space<vmem>>, vector<16x64xf32>
    %cst = arith.constant dense<0.000000e+00> : vector<16x64xf32>
    %3 = tpu.matmul %0, %2, %cst {dimension_numbers = #tpu.dot_dimension_numbers<[1], [0], [0], [1], [0, 0, 1, 1], [], []>} : vector<16x16xf32>, vector<16x64xf32>, vector<16x64xf32> -> vector<16x64xf32>
    %c0_5 = arith.constant 0 : index
    %c0_6 = arith.constant 0 : index
    %4 = vector.load %arg4[%c0_5, %c0_6] : memref<1x64xf32, #tpu.memory_space<vmem>>, vector<1x64xf32>
    %5 = vector.broadcast %4 : vector<1x64xf32> to vector<16x64xf32>
    %6 = arith.addf %3, %5 : vector<16x64xf32>
    %c0_7 = arith.constant 0 : index
    %c0_8 = arith.constant 0 : index
    %7 = vector.load %arg5[%c0_7, %c0_8] : memref<24x64xf32, #tpu.memory_space<vmem>>, vector<24x64xf32>
    %cst_9 = arith.constant dense<0.000000e+00> : vector<2x64xf32>
    %8 = tpu.matmul %1, %7, %cst_9 {dimension_numbers = #tpu.dot_dimension_numbers<[1], [0], [0], [1], [0, 0, 1, 1], [], []>} : vector<2x24xf32>, vector<24x64xf32>, vector<2x64xf32> -> vector<2x64xf32>
    %c0_10 = arith.constant 0 : index
    %c0_11 = arith.constant 0 : index
    %9 = vector.load %arg6[%c0_10, %c0_11] : memref<1x64xf32, #tpu.memory_space<vmem>>, vector<1x64xf32>
    %10 = vector.broadcast %9 : vector<1x64xf32> to vector<2x64xf32>
    %11 = arith.addf %8, %10 : vector<2x64xf32>
    %c0_12 = arith.constant 0 : index
    %c0_13 = arith.constant 0 : index
    %12 = vector.load %arg10[%c0_12, %c0_13] : memref<16x2xf32, #tpu.memory_space<vmem>>, vector<16x2xf32>
    %cst_14 = arith.constant dense<0.000000e+00> : vector<16x64xf32>
    %13 = tpu.matmul %12, %11, %cst_14 {dimension_numbers = #tpu.dot_dimension_numbers<[1], [0], [0], [1], [0, 0, 1, 1], [], []>} : vector<16x2xf32>, vector<2x64xf32>, vector<16x64xf32> -> vector<16x64xf32>
    %14 = arith.mulf %6, %13 : vector<16x64xf32>
    %15 = vector.extract_strided_slice %14 {offsets = [0, 0], sizes = [16, 32], strides = [1, 1]} : vector<16x64xf32> to vector<16x32xf32>
    %16 = vector.extract_strided_slice %14 {offsets = [0, 32], sizes = [16, 32], strides = [1, 1]} : vector<16x64xf32> to vector<16x32xf32>
    %17 = arith.mulf %15, %16 : vector<16x32xf32>
    %18 = tpu.concatenate %15, %17 in 1 : vector<16x32xf32>, vector<16x32xf32> -> vector<16x64xf32>
    %c0_15 = arith.constant 0 : index
    %c0_16 = arith.constant 0 : index
    %19 = vector.load %arg7[%c0_15, %c0_16] : memref<64x32xf32, #tpu.memory_space<vmem>>, vector<64x32xf32>
    %cst_17 = arith.constant dense<0.000000e+00> : vector<16x32xf32>
    %20 = tpu.matmul %18, %19, %cst_17 {dimension_numbers = #tpu.dot_dimension_numbers<[1], [0], [0], [1], [0, 0, 1, 1], [], []>} : vector<16x64xf32>, vector<64x32xf32>, vector<16x32xf32> -> vector<16x32xf32>
    %21 = math.absf %20 : vector<16x32xf32>
    %22 = math.sqrt %21 : vector<16x32xf32>
    %cst_18 = arith.constant 0.000000e+00 : f32
    %23 = vector.broadcast %cst_18 : f32 to vector<16x32xf32>
    %24 = arith.cmpf olt, %20, %23 : vector<16x32xf32>
    %cst_19 = arith.constant 0.000000e+00 : f32
    %25 = vector.broadcast %cst_19 : f32 to vector<16x32xf32>
    %26 = arith.subf %25, %22 : vector<16x32xf32>
    %27 = arith.select %24, %26, %22 : vector<16x32xi1>, vector<16x32xf32>
    %28 = arith.mulf %27, %27 : vector<16x32xf32>
    %c0_20 = arith.constant 0 : index
    %c0_21 = arith.constant 0 : index
    %29 = vector.load %arg8[%c0_20, %c0_21] : memref<32x2xf32, #tpu.memory_space<vmem>>, vector<32x2xf32>
    %cst_22 = arith.constant dense<0.000000e+00> : vector<16x2xf32>
    %30 = tpu.matmul %28, %29, %cst_22 {dimension_numbers = #tpu.dot_dimension_numbers<[1], [0], [0], [1], [0, 0, 1, 1], [], []>} : vector<16x32xf32>, vector<32x2xf32>, vector<16x2xf32> -> vector<16x2xf32>
    %c0_23 = arith.constant 0 : index
    %c0_24 = arith.constant 0 : index
    %31 = vector.load %arg11[%c0_23, %c0_24] : memref<2x16xf32, #tpu.memory_space<vmem>>, vector<2x16xf32>
    %cst_25 = arith.constant dense<0.000000e+00> : vector<2x2xf32>
    %32 = tpu.matmul %31, %30, %cst_25 {dimension_numbers = #tpu.dot_dimension_numbers<[1], [0], [0], [1], [0, 0, 1, 1], [], []>} : vector<2x16xf32>, vector<16x2xf32>, vector<2x2xf32> -> vector<2x2xf32>
    %cst_26 = arith.constant 1.000000e-24 : f32
    %33 = vector.broadcast %cst_26 : f32 to vector<2x2xf32>
    %34 = arith.maximumf %32, %33 : vector<2x2xf32>
    %35 = math.rsqrt %34 : vector<2x2xf32>
    %c0_27 = arith.constant 0 : index
    %c0_28 = arith.constant 0 : index
    %36 = vector.load %arg10[%c0_27, %c0_28] : memref<16x2xf32, #tpu.memory_space<vmem>>, vector<16x2xf32>
    %cst_29 = arith.constant dense<0.000000e+00> : vector<16x2xf32>
    %37 = tpu.matmul %36, %35, %cst_29 {dimension_numbers = #tpu.dot_dimension_numbers<[1], [0], [0], [1], [0, 0, 1, 1], [], []>} : vector<16x2xf32>, vector<2x2xf32>, vector<16x2xf32> -> vector<16x2xf32>
    %c0_30 = arith.constant 0 : index
    %c0_31 = arith.constant 0 : index
    %38 = vector.load %arg9[%c0_30, %c0_31] : memref<2x32xf32, #tpu.memory_space<vmem>>, vector<2x32xf32>
    %cst_32 = arith.constant dense<0.000000e+00> : vector<16x32xf32>
    %39 = tpu.matmul %37, %38, %cst_32 {dimension_numbers = #tpu.dot_dimension_numbers<[1], [0], [0], [1], [0, 0, 1, 1], [], []>} : vector<16x2xf32>, vector<2x32xf32>, vector<16x32xf32> -> vector<16x32xf32>
    %40 = arith.mulf %27, %39 : vector<16x32xf32>
    %c0_33 = arith.constant 0 : index
    %c0_34 = arith.constant 0 : index
    %41 = vector.load %arg12[%c0_33, %c0_34] : memref<16x32xf32, #tpu.memory_space<vmem>>, vector<16x32xf32>
    tpu.vector_store %arg12[%c0_33, %c0_34], %40 {strides = array<i32>} : memref<16x32xf32, #tpu.memory_space<vmem>>, vector<16x32xf32>,
    return
  }
  func.func @transform_0(%arg0: i32) -> (i32, i32) {
    %c0_i32 = arith.constant 0 : i32
    %c0_i32_0 = arith.constant 0 : i32
    %c0_i32_1 = arith.constant 0 : i32
    return %c0_i32, %c0_i32_0 : i32, i32
  }
  func.func @transform_1(%arg0: i32) -> (i32, i32) {
    %c0_i32 = arith.constant 0 : i32
    %c0_i32_0 = arith.constant 0 : i32
    %c0_i32_1 = arith.constant 0 : i32
    return %c0_i32, %c0_i32_0 : i32, i32
  }
  func.func @transform_2(%arg0: i32) -> (i32, i32) {
    %c0_i32 = arith.constant 0 : i32
    %c0_i32_0 = arith.constant 0 : i32
    %c0_i32_1 = arith.constant 0 : i32
    return %c0_i32, %c0_i32_0 : i32, i32
  }
  func.func @transform_3(%arg0: i32) -> (i32, i32) {
    %c0_i32 = arith.constant 0 : i32
    %c0_i32_0 = arith.constant 0 : i32
    %c0_i32_1 = arith.constant 0 : i32
    return %c0_i32, %c0_i32_0 : i32, i32
  }
  func.func @transform_4(%arg0: i32) -> (i32, i32) {
    %c0_i32 = arith.constant 0 : i32
    %c0_i32_0 = arith.constant 0 : i32
    %c0_i32_1 = arith.constant 0 : i32
    return %c0_i32, %c0_i32_0 : i32, i32
  }
  func.func @transform_5(%arg0: i32) -> (i32, i32) {
    %c0_i32 = arith.constant 0 : i32
    %c0_i32_0 = arith.constant 0 : i32
    %c0_i32_1 = arith.constant 0 : i32
    return %c0_i32, %c0_i32_0 : i32, i32
  }
  func.func @transform_6(%arg0: i32) -> (i32, i32) {
    %c0_i32 = arith.constant 0 : i32
    %c0_i32_0 = arith.constant 0 : i32
    %c0_i32_1 = arith.constant 0 : i32
    return %c0_i32, %c0_i32_0 : i32, i32
  }
  func.func @transform_7(%arg0: i32) -> (i32, i32) {
    %c0_i32 = arith.constant 0 : i32
    %c0_i32_0 = arith.constant 0 : i32
    %c0_i32_1 = arith.constant 0 : i32
    return %c0_i32, %c0_i32_0 : i32, i32
  }
  func.func @transform_8(%arg0: i32) -> (i32, i32) {
    %c0_i32 = arith.constant 0 : i32
    %c0_i32_0 = arith.constant 0 : i32
    %c0_i32_1 = arith.constant 0 : i32
    return %c0_i32, %c0_i32_0 : i32, i32
  }
  func.func @transform_9(%arg0: i32) -> (i32, i32) {
    %c0_i32 = arith.constant 0 : i32
    %c0_i32_0 = arith.constant 0 : i32
    %c0_i32_1 = arith.constant 0 : i32
    return %c0_i32, %c0_i32_0 : i32, i32
  }
  func.func @transform_10(%arg0: i32) -> (i32, i32) {
    %c0_i32 = arith.constant 0 : i32
    %c0_i32_0 = arith.constant 0 : i32
    %c0_i32_1 = arith.constant 0 : i32
    return %c0_i32, %c0_i32_0 : i32, i32
  }
  func.func @transform_11(%arg0: i32) -> (i32, i32) {
    %c0_i32 = arith.constant 0 : i32
    %c0_i32_0 = arith.constant 0 : i32
    %c0_i32_1 = arith.constant 0 : i32
    return %c0_i32, %c0_i32_0 : i32, i32
  }
}

</mosaic_0001>

<llo_original>
// kernel: tpu_custom_call.1
$region0: #{tpu_custom_call.1}
  #allocation0 [shape = 'u32[]', space=smem, size = 0x4, offset = 0x4, fixed_abs, tag = 'smem constant byte address 0x4 - core index']
  #allocation1 [shape = 'u32[144,128]{1,0:T(1,128)}', space=vmem, size = 0x12000, scoped, tag = 'internal scratch']
  %s0 = inlined_call_operand.vmem [shape: f32[16,16], index: 0, kind: input, shape index: {}]
  %s1 = inlined_call_operand.vmem [shape: f32[2,24], index: 1, kind: input, shape index: {}]
  %s2 = inlined_call_operand.vmem [shape: f32[16,64], index: 2, kind: input, shape index: {}]
  %s3 = inlined_call_operand.vmem [shape: f32[1,64], index: 3, kind: input, shape index: {}]
  %s4 = inlined_call_operand.vmem [shape: f32[24,64], index: 4, kind: input, shape index: {}]
  %s5 = inlined_call_operand.vmem [shape: f32[1,64], index: 5, kind: input, shape index: {}]
  %s6 = inlined_call_operand.vmem [shape: f32[64,32], index: 6, kind: input, shape index: {}]
  %s7 = inlined_call_operand.vmem [shape: f32[32,2], index: 7, kind: input, shape index: {}]
  %s8 = inlined_call_operand.vmem [shape: f32[2,32], index: 8, kind: input, shape index: {}]
  %s9 = inlined_call_operand.vmem [shape: f32[16,2], index: 9, kind: input, shape index: {}]
  %s10 = inlined_call_operand.vmem [shape: f32[2,16], index: 10, kind: input, shape index: {}]
  %s11 = inlined_call_operand.hbm [shape: f32[16,32], index: 11, kind: output, shape index: {}]
  %s12 = sld [smem:[#allocation0]]
  $region54: #{tpu_custom_call.1} parent=0
    _
  %s14 = ssub.s32 1, %s12
  %s15 = scalar_select 0, %s14, %s12
  $region1: #{tpu_custom_call.1} parent=0
    #allocation2 [shape = 'u8[8192]{0}', space=vmem, size = 0x2000, scoped, tag = 'output window, operand 0, single buffered']
    #allocation3 [shape = 's32[1]{0}', space=sflag, size = 0x4, scoped, tag = 'scoped memory for tpu_custom_call.1']
    %16 = vsyncpa [#allocation3], 0
    // Predicated region
    $region2: #{tpu_custom_call.1} parent=1 // pred_check
      _
    $region3: #{tpu_custom_call.1} parent=1 // pred_check_branch
      %18 = sbr.rel (0) target = $region5
    $region4: #{tpu_custom_call.1} parent=1 // pred_region
      _
    $region5: #{tpu_custom_call.1} parent=1 // pred_fallthru
      _
    // Predicated region
    $region6: #{tpu_custom_call.1} parent=1 // pred_check
      _
    $region7: #{tpu_custom_call.1} parent=1 // pred_check_branch
      %20 = sbr.rel (0) target = $region9
    $region8: #{tpu_custom_call.1} parent=1 // pred_region
      _
    $region9: #{tpu_custom_call.1} parent=1 // pred_fallthru
      _
    // Predicated region
    $region10: #{tpu_custom_call.1} parent=1 // pred_check
      _
    $region11: #{tpu_custom_call.1} parent=1 // pred_check_branch
      %22 = sbr.rel (0) target = $region13
    $region12: #{tpu_custom_call.1} parent=1 // pred_region
      _
    $region13: #{tpu_custom_call.1} parent=1 // pred_fallthru
      _
    // Predicated region
    $region14: #{tpu_custom_call.1} parent=1 // pred_check
      _
    $region15: #{tpu_custom_call.1} parent=1 // pred_check_branch
      %24 = sbr.rel (0) target = $region17
    $region16: #{tpu_custom_call.1} parent=1 // pred_region
      _
    $region17: #{tpu_custom_call.1} parent=1 // pred_fallthru
      _
    // Predicated region
    $region18: #{tpu_custom_call.1} parent=1 // pred_check
      _
    $region19: #{tpu_custom_call.1} parent=1 // pred_check_branch
      %26 = sbr.rel (0) target = $region21
    $region20: #{tpu_custom_call.1} parent=1 // pred_region
      _
    $region21: #{tpu_custom_call.1} parent=1 // pred_fallthru
      _
    // Predicated region
    $region22: #{tpu_custom_call.1} parent=1 // pred_check
      _
    $region23: #{tpu_custom_call.1} parent=1 // pred_check_branch
      %28 = sbr.rel (0) target = $region25
    $region24: #{tpu_custom_call.1} parent=1 // pred_region
      _
    $region25: #{tpu_custom_call.1} parent=1 // pred_fallthru
      _
    // Predicated region
    $region26: #{tpu_custom_call.1} parent=1 // pred_check
      _
    $region27: #{tpu_custom_call.1} parent=1 // pred_check_branch
      %30 = sbr.rel (0) target = $region29
    $region28: #{tpu_custom_call.1} parent=1 // pred_region
      _
    $region29: #{tpu_custom_call.1} parent=1 // pred_fallthru
      _
    // Predicated region
    $region30: #{tpu_custom_call.1} parent=1 // pred_check
      _
    $region31: #{tpu_custom_call.1} parent=1 // pred_check_branch
      %32 = sbr.rel (0) target = $region33
    $region32: #{tpu_custom_call.1} parent=1 // pred_region
      _
    $region33: #{tpu_custom_call.1} parent=1 // pred_fallthru
      _
    // Predicated region
    $region34: #{tpu_custom_call.1} parent=1 // pred_check
      _
    $region35: #{tpu_custom_call.1} parent=1 // pred_check_branch
      %34 = sbr.rel (0) target = $region37
    $region36: #{tpu_custom_call.1} parent=1 // pred_region
      _
    $region37: #{tpu_custom_call.1} parent=1 // pred_fallthru
      _
    // Predicated region
    $region38: #{tpu_custom_call.1} parent=1 // pred_check
      _
    $region39: #{tpu_custom_call.1} parent=1 // pred_check_branch
      %36 = sbr.rel (0) target = $region41
    $region40: #{tpu_custom_call.1} parent=1 // pred_region
      _
    $region41: #{tpu_custom_call.1} parent=1 // pred_fallthru
      _
    // Predicated region
    $region42: #{tpu_custom_call.1} parent=1 // pred_check
      _
    $region43: #{tpu_custom_call.1} parent=1 // pred_check_branch
      %38 = sbr.rel (0) target = $region45
    $region44: #{tpu_custom_call.1} parent=1 // pred_region
      _
    $region45: #{tpu_custom_call.1} parent=1 // pred_fallthru
      _
    %v39 = vld [vmem:[%s0] sm:$0xff]
    %v40 = vld [vmem:[%s0 + $0x8] sm:$0xff]
    %v41 = vld [vmem:[%s1] sm:$0x3]
    %v42 = vld [vmem:[%s2] sm:$0xff]
    %v43 = vld [vmem:[%s2 + $0x8] sm:$0xff]
    %v44 = vld [vmem:[%s3] sm:$0x1]
    %v46 = vlaneseq
    %v47 = vshrl.u32 %v46, 7
    %v48 = vsub.s32 0, %v47
    %v49 = vrot.slane %v44, %v48
    %vm51 = vcmask 130048
    %v53 = vsel %vm51, %v39, 0
    %v56 = vsel %vm51, %v40, 0
    %58 = vmatprep.subr.mxu0 0.0
    %59 = vmatpush1.msra.mxu0 0.0
    %60 = vmatprep.subr.mxu0 0.0
    %61 = vmatpush1.msra.mxu0 0.0
    %62 = vmatprep.subr.mxu0 0.0
    %63 = vmatpush1.msra.mxu0 0.0
    %64 = vmatprep.subr.mxu0 0.0
    %65 = vmatpush1.msra.mxu0 0.0
    %66 = vmatprep.subr.mxu0 0.0
    %67 = vmatpush1.msra.mxu0 0.0
    %68 = vmatprep.subr.mxu0 0.0
    %69 = vmatpush1.msra.mxu0 0.0
    %70 = vmatprep.subr.mxu0 0.0
    %71 = vmatpush1.msra.mxu0 0.0
    %72 = vmatprep.subr.mxu0 0.0
    %73 = vmatpush1.msra.mxu0 0.0
    %74 = vmatprep.subr.mxu0 0.0
    %75 = vmatpush1.msra.mxu0 0.0
    %76 = vmatprep.subr.mxu0 0.0
    %77 = vmatpush1.msra.mxu0 0.0
    %78 = vmatprep.subr.mxu0 0.0
    %79 = vmatpush1.msra.mxu0 0.0
    %80 = vmatprep.subr.mxu0 0.0
    %81 = vmatpush1.msra.mxu0 0.0
    %82 = vmatprep.subr.mxu0 0.0
    %83 = vmatpush1.msra.mxu0 0.0
    %84 = vmatprep.subr.mxu0 0.0
    %85 = vmatpush1.msra.mxu0 0.0
    %86 = vmatprep.subr.mxu0 0.0
    %87 = vmatpush1.msra.mxu0 %v43
    %88 = vmatprep.subr.mxu0 0.0
    %89 = vmatpush1.msra.mxu0 %v42
    %90 = vmatprep.subr.mxu0 0.0
    %91 = vmatpush2.msra.mxu0 0.0
    %92 = vmatprep.subr.mxu0 0.0
    %93 = vmatpush2.msra.mxu0 0.0
    %94 = vmatprep.subr.mxu0 0.0
    %95 = vmatpush2.msra.mxu0 0.0
    %96 = vmatprep.subr.mxu0 0.0
    %97 = vmatpush2.msra.mxu0 0.0
    %98 = vmatprep.subr.mxu0 0.0
    %99 = vmatpush2.msra.mxu0 0.0
    %100 = vmatprep.subr.mxu0 0.0
    %101 = vmatpush2.msra.mxu0 0.0
    %102 = vmatprep.subr.mxu0 0.0
    %103 = vmatpush2.msra.mxu0 0.0
    %104 = vmatprep.subr.mxu0 0.0
    %105 = vmatpush2.msra.mxu0 0.0
    %106 = vmatprep.subr.mxu0 0.0
    %107 = vmatpush2.msra.mxu0 0.0
    %108 = vmatprep.subr.mxu0 0.0
    %109 = vmatpush2.msra.mxu0 0.0
    %110 = vmatprep.subr.mxu0 0.0
    %111 = vmatpush2.msra.mxu0 0.0
    %112 = vmatprep.subr.mxu0 0.0
    %113 = vmatpush2.msra.mxu0 0.0
    %114 = vmatprep.subr.mxu0 0.0
    %115 = vmatpush2.msra.mxu0 0.0
    %116 = vmatprep.subr.mxu0 0.0
    %117 = vmatpush2.msra.mxu0 0.0
    %118 = vmatprep.subr.mxu0 0.0
    %119 = vmatpush2.msra.mxu0 0.0
    %120 = vmatprep.subr.mxu0 0.0
    %121 = vmatpush2.msra.mxu0 0.0
    %122 = vmatprep.mubr.f32.mxu0 0.0
    %123 = vmatmul.mubr.f32.gmra.mxu0 %v53
    %v124 = vpop.f32.mrf.mxu0
    %v125 = vadd.f32 %v49, %v124
    %v126 = vpop.f32.mrf.mxu0
    %127 = vmatprep.mubr.f32.mxu0 0.0
    %128 = vmatmul.mubr.f32.gmra.mxu0 %v56
    %v129 = vpop.f32.mrf.mxu0
    %v130 = vadd.f32 %v49, %v129
    %v131 = vpop.f32.mrf.mxu0
    %132 = vdwg.mxu0
    %v133 = vld [vmem:[%s4] sm:$0xff]
    %v134 = vld [vmem:[%s4 + $0x8] sm:$0xff]
    %v135 = vld [vmem:[%s4 + $0x10] sm:$0xff]
    %v136 = vld [vmem:[%s5] sm:$0x1]
    %v138 = vlaneseq
    %v139 = vshrl.u32 %v138, 7
    %v140 = vsub.s32 0, %v139
    %v141 = vrot.slane %v136, %v140
    %vm143 = vcmask 195584
    %v145 = vsel %vm143, %v41, 0
    %147 = vmatprep.subr.mxu0 0.0
    %148 = vmatpush1.msra.mxu0 0.0
    %149 = vmatprep.subr.mxu0 0.0
    %150 = vmatpush1.msra.mxu0 0.0
    %151 = vmatprep.subr.mxu0 0.0
    %152 = vmatpush1.msra.mxu0 0.0
    %153 = vmatprep.subr.mxu0 0.0
    %154 = vmatpush1.msra.mxu0 0.0
    %155 = vmatprep.subr.mxu0 0.0
    %156 = vmatpush1.msra.mxu0 0.0
    %157 = vmatprep.subr.mxu0 0.0
    %158 = vmatpush1.msra.mxu0 0.0
    %159 = vmatprep.subr.mxu0 0.0
    %160 = vmatpush1.msra.mxu0 0.0
    %161 = vmatprep.subr.mxu0 0.0
    %162 = vmatpush1.msra.mxu0 0.0
    %163 = vmatprep.subr.mxu0 0.0
    %164 = vmatpush1.msra.mxu0 0.0
    %165 = vmatprep.subr.mxu0 0.0
    %166 = vmatpush1.msra.mxu0 0.0
    %167 = vmatprep.subr.mxu0 0.0
    %168 = vmatpush1.msra.mxu0 0.0
    %169 = vmatprep.subr.mxu0 0.0
    %170 = vmatpush1.msra.mxu0 0.0
    %171 = vmatprep.subr.mxu0 0.0
    %172 = vmatpush1.msra.mxu0 0.0
    %173 = vmatprep.subr.mxu0 0.0
    %174 = vmatpush1.msra.mxu0 %v135
    %175 = vmatprep.subr.mxu0 0.0
    %176 = vmatpush1.msra.mxu0 %v134
    %177 = vmatprep.subr.mxu0 0.0
    %178 = vmatpush1.msra.mxu0 %v133
    %179 = vmatprep.subr.mxu0 0.0
    %180 = vmatpush2.msra.mxu0 0.0
    %181 = vmatprep.subr.mxu0 0.0
    %182 = vmatpush2.msra.mxu0 0.0
    %183 = vmatprep.subr.mxu0 0.0
    %184 = vmatpush2.msra.mxu0 0.0
    %185 = vmatprep.subr.mxu0 0.0
    %186 = vmatpush2.msra.mxu0 0.0
    %187 = vmatprep.subr.mxu0 0.0
    %188 = vmatpush2.msra.mxu0 0.0
    %189 = vmatprep.subr.mxu0 0.0
    %190 = vmatpush2.msra.mxu0 0.0
    %191 = vmatprep.subr.mxu0 0.0
    %192 = vmatpush2.msra.mxu0 0.0
    %193 = vmatprep.subr.mxu0 0.0
    %194 = vmatpush2.msra.mxu0 0.0
    %195 = vmatprep.subr.mxu0 0.0
    %196 = vmatpush2.msra.mxu0 0.0
    %197 = vmatprep.subr.mxu0 0.0
    %198 = vmatpush2.msra.mxu0 0.0
    %199 = vmatprep.subr.mxu0 0.0
    %200 = vmatpush2.msra.mxu0 0.0
    %201 = vmatprep.subr.mxu0 0.0
    %202 = vmatpush2.msra.mxu0 0.0
    %203 = vmatprep.subr.mxu0 0.0
    %204 = vmatpush2.msra.mxu0 0.0
    %205 = vmatprep.subr.mxu0 0.0
    %206 = vmatpush2.msra.mxu0 0.0
    %207 = vmatprep.subr.mxu0 0.0
    %208 = vmatpush2.msra.mxu0 0.0
    %209 = vmatprep.subr.mxu0 0.0
    %210 = vmatpush2.msra.mxu0 0.0
    %211 = vmatprep.mubr.f32.mxu0 0.0
    %212 = vmatmul.mubr.f32.gmra.mxu0 %v145
    %v213 = vpop.f32.mrf.mxu0
    %v214 = vadd.f32 %v141, %v213
    %v215 = vpop.f32.mrf.mxu0
    %216 = vdwg.mxu0
    %v217 = vld [vmem:[%s9] sm:$0xff]
    %v218 = vld [vmem:[%s9 + $0x8] sm:$0xff]
    %vm219 = vcmask 15360
    %v221 = vsel %vm219, %v217, 0
    %v224 = vsel %vm219, %v218, 0
    %vm226 = vcmask 1041408
    %v228 = vsel %vm226, %v214, 0
    %230 = vmatprep.subr.mxu0 0.0
    %231 = vmatpush1.msra.mxu0 0.0
    %232 = vmatprep.subr.mxu0 0.0
    %233 = vmatpush1.msra.mxu0 0.0
    %234 = vmatprep.subr.mxu0 0.0
    %235 = vmatpush1.msra.mxu0 0.0
    %236 = vmatprep.subr.mxu0 0.0
    %237 = vmatpush1.msra.mxu0 0.0
    %238 = vmatprep.subr.mxu0 0.0
    %239 = vmatpush1.msra.mxu0 0.0
    %240 = vmatprep.subr.mxu0 0.0
    %241 = vmatpush1.msra.mxu0 0.0
    %242 = vmatprep.subr.mxu0 0.0
    %243 = vmatpush1.msra.mxu0 0.0
    %244 = vmatprep.subr.mxu0 0.0
    %245 = vmatpush1.msra.mxu0 0.0
    %246 = vmatprep.subr.mxu0 0.0
    %247 = vmatpush1.msra.mxu0 0.0
    %248 = vmatprep.subr.mxu0 0.0
    %249 = vmatpush1.msra.mxu0 0.0
    %250 = vmatprep.subr.mxu0 0.0
    %251 = vmatpush1.msra.mxu0 0.0
    %252 = vmatprep.subr.mxu0 0.0
    %253 = vmatpush1.msra.mxu0 0.0
    %254 = vmatprep.subr.mxu0 0.0
    %255 = vmatpush1.msra.mxu0 0.0
    %256 = vmatprep.subr.mxu0 0.0
    %257 = vmatpush1.msra.mxu0 0.0
    %258 = vmatprep.subr.mxu0 0.0
    %259 = vmatpush1.msra.mxu0 0.0
    %260 = vmatprep.subr.mxu0 0.0
    %261 = vmatpush1.msra.mxu0 %v228
    %262 = vmatprep.subr.mxu0 0.0
    %263 = vmatpush2.msra.mxu0 0.0
    %264 = vmatprep.subr.mxu0 0.0
    %265 = vmatpush2.msra.mxu0 0.0
    %266 = vmatprep.subr.mxu0 0.0
    %267 = vmatpush2.msra.mxu0 0.0
    %268 = vmatprep.subr.mxu0 0.0
    %269 = vmatpush2.msra.mxu0 0.0
    %270 = vmatprep.subr.mxu0 0.0
    %271 = vmatpush2.msra.mxu0 0.0
    %272 = vmatprep.subr.mxu0 0.0
    %273 = vmatpush2.msra.mxu0 0.0
    %274 = vmatprep.subr.mxu0 0.0
    %275 = vmatpush2.msra.mxu0 0.0
    %276 = vmatprep.subr.mxu0 0.0
    %277 = vmatpush2.msra.mxu0 0.0
    %278 = vmatprep.subr.mxu0 0.0
    %279 = vmatpush2.msra.mxu0 0.0
    %280 = vmatprep.subr.mxu0 0.0
    %281 = vmatpush2.msra.mxu0 0.0
    %282 = vmatprep.subr.mxu0 0.0
    %283 = vmatpush2.msra.mxu0 0.0
    %284 = vmatprep.subr.mxu0 0.0
    %285 = vmatpush2.msra.mxu0 0.0
    %286 = vmatprep.subr.mxu0 0.0
    %287 = vmatpush2.msra.mxu0 0.0
    %288 = vmatprep.subr.mxu0 0.0
    %289 = vmatpush2.msra.mxu0 0.0
    %290 = vmatprep.subr.mxu0 0.0
    %291 = vmatpush2.msra.mxu0 0.0
    %292 = vmatprep.subr.mxu0 0.0
    %293 = vmatpush2.msra.mxu0 0.0
    %294 = vmatprep.mubr.f32.mxu0 0.0
    %295 = vmatmul.mubr.f32.gmra.mxu0 %v221
    %v296 = vpop.f32.mrf.mxu0
    %v297 = vadd.f32 0.0, %v296
    %v298 = vpop.f32.mrf.mxu0
    %299 = vmatprep.mubr.f32.mxu0 0.0
    %300 = vmatmul.mubr.f32.gmra.mxu0 %v224
    %v301 = vpop.f32.mrf.mxu0
    %v302 = vadd.f32 0.0, %v301
    %v303 = vpop.f32.mrf.mxu0
    %304 = vdwg.mxu0
    %v305 = vmul.f32 %v125, %v297
    %v306 = vmul.f32 %v130, %v302
    %309 = vrot.lane.b32.xlu0 %v305, 96
    %v310 = vpop.permute.xlu0 %309
    %311 = vrot.lane.b32.xlu0 %v306, 96
    %v312 = vpop.permute.xlu0 %311
    %v315 = vmul.f32 %v305, %v310
    %v316 = vmul.f32 %v306, %v312
    %319 = vrot.lane.b32.xlu0 %v315, 32
    %v320 = vpop.permute.xlu0 %319
    %321 = vrot.lane.b32.xlu0 %v316, 32
    %v322 = vpop.permute.xlu0 %321
    %vm325 = vcmask 261120
    %v326 = vsel %vm325, %v305, %v320
    %v327 = vsel %vm325, %v306, %v322
    %v328 = vld [vmem:[%s6] sm:$0xff]
    %v329 = vld [vmem:[%s6 + $0x8] sm:$0xff]
    %v330 = vld [vmem:[%s6 + $0x10] sm:$0xff]
    %v331 = vld [vmem:[%s6 + $0x18] sm:$0xff]
    %v332 = vld [vmem:[%s6 + $0x20] sm:$0xff]
    %v333 = vld [vmem:[%s6 + $0x28] sm:$0xff]
    %v334 = vld [vmem:[%s6 + $0x30] sm:$0xff]
    %v335 = vld [vmem:[%s6 + $0x38] sm:$0xff]
    %vm336 = vcmask 523264
    %v338 = vsel %vm336, %v326, 0
    %v341 = vsel %vm336, %v327, 0
    %343 = vmatprep.subr.mxu0 0.0
    %344 = vmatpush1.msra.mxu0 0.0
    %345 = vmatprep.subr.mxu0 0.0
    %346 = vmatpush1.msra.mxu0 0.0
    %347 = vmatprep.subr.mxu0 0.0
    %348 = vmatpush1.msra.mxu0 0.0
    %349 = vmatprep.subr.mxu0 0.0
    %350 = vmatpush1.msra.mxu0 0.0
    %351 = vmatprep.subr.mxu0 0.0
    %352 = vmatpush1.msra.mxu0 0.0
    %353 = vmatprep.subr.mxu0 0.0
    %354 = vmatpush1.msra.mxu0 0.0
    %355 = vmatprep.subr.mxu0 0.0
    %356 = vmatpush1.msra.mxu0 0.0
    %357 = vmatprep.subr.mxu0 0.0
    %358 = vmatpush1.msra.mxu0 0.0
    %359 = vmatprep.subr.mxu0 0.0
    %360 = vmatpush1.msra.mxu0 %v335
    %361 = vmatprep.subr.mxu0 0.0
    %362 = vmatpush1.msra.mxu0 %v334
    %363 = vmatprep.subr.mxu0 0.0
    %364 = vmatpush1.msra.mxu0 %v333
    %365 = vmatprep.subr.mxu0 0.0
    %366 = vmatpush1.msra.mxu0 %v332
    %367 = vmatprep.subr.mxu0 0.0
    %368 = vmatpush1.msra.mxu0 %v331
    %369 = vmatprep.subr.mxu0 0.0
    %370 = vmatpush1.msra.mxu0 %v330
    %371 = vmatprep.subr.mxu0 0.0
    %372 = vmatpush1.msra.mxu0 %v329
    %373 = vmatprep.subr.mxu0 0.0
    %374 = vmatpush1.msra.mxu0 %v328
    %375 = vmatprep.subr.mxu0 0.0
    %376 = vmatpush2.msra.mxu0 0.0
    %377 = vmatprep.subr.mxu0 0.0
    %378 = vmatpush2.msra.mxu0 0.0
    %379 = vmatprep.subr.mxu0 0.0
    %380 = vmatpush2.msra.mxu0 0.0
    %381 = vmatprep.subr.mxu0 0.0
    %382 = vmatpush2.msra.mxu0 0.0
    %383 = vmatprep.subr.mxu0 0.0
    %384 = vmatpush2.msra.mxu0 0.0
    %385 = vmatprep.subr.mxu0 0.0
    %386 = vmatpush2.msra.mxu0 0.0
    %387 = vmatprep.subr.mxu0 0.0
    %388 = vmatpush2.msra.mxu0 0.0
    %389 = vmatprep.subr.mxu0 0.0
    %390 = vmatpush2.msra.mxu0 0.0
    %391 = vmatprep.subr.mxu0 0.0
    %392 = vmatpush2.msra.mxu0 0.0
    %393 = vmatprep.subr.mxu0 0.0
    %394 = vmatpush2.msra.mxu0 0.0
    %395 = vmatprep.subr.mxu0 0.0
    %396 = vmatpush2.msra.mxu0 0.0
    %397 = vmatprep.subr.mxu0 0.0
    %398 = vmatpush2.msra.mxu0 0.0
    %399 = vmatprep.subr.mxu0 0.0
    %400 = vmatpush2.msra.mxu0 0.0
    %401 = vmatprep.subr.mxu0 0.0
    %402 = vmatpush2.msra.mxu0 0.0
    %403 = vmatprep.subr.mxu0 0.0
    %404 = vmatpush2.msra.mxu0 0.0
    %405 = vmatprep.subr.mxu0 0.0
    %406 = vmatpush2.msra.mxu0 0.0
    %407 = vmatprep.mubr.f32.mxu0 0.0
    %408 = vmatmul.mubr.f32.gmra.mxu0 %v338
    %v409 = vpop.f32.mrf.mxu0
    %v410 = vadd.f32 0.0, %v409
    %v411 = vpop.f32.mrf.mxu0
    %412 = vmatprep.mubr.f32.mxu0 0.0
    %413 = vmatmul.mubr.f32.gmra.mxu0 %v341
    %v414 = vpop.f32.mrf.mxu0
    %v415 = vadd.f32 0.0, %v414
    %v416 = vpop.f32.mrf.mxu0
    %417 = vdwg.mxu0
    %v418 = vand.u32 2147483647, %v410
    %v419 = vand.u32 2147483647, %v415
    %v420 = vrsqrt.pop %v418
    %v421 = vmul.f32 %v418, %v420
    %vm422 = vcmp.eq.f32.partialorder %v418, inf
    %v423 = vsel %vm422, %v418, %v421
    %vm424 = vcmp.eq.f32.partialorder %v418, 0.0
    %v425 = vand.u32 %v418, 2147483648
    %v426 = vsel %vm424, %v425, %v423
    %v427 = vrsqrt.pop %v419
    %v428 = vmul.f32 %v419, %v427
    %vm429 = vcmp.eq.f32.partialorder %v419, inf
    %v430 = vsel %vm429, %v419, %v428
    %vm431 = vcmp.eq.f32.partialorder %v419, 0.0
    %v432 = vand.u32 %v419, 2147483648
    %v433 = vsel %vm431, %v432, %v430
    %vm434 = vcmp.lt.f32.partialorder %v410, 0.0
    %vm435 = vcmp.lt.f32.partialorder %v415, 0.0
    %v436 = vsub.f32 0.0, %v426
    %v437 = vsub.f32 0.0, %v433
    %v438 = vsel %vm434, %v436, %v426
    %v439 = vsel %vm435, %v437, %v433
    %v440 = vmul.f32 %v438, %v438
    %v441 = vmul.f32 %v439, %v439
    %v442 = vld [vmem:[%s7] sm:$0xff]
    %v443 = vld [vmem:[%s7 + $0x8] sm:$0xff]
    %v444 = vld [vmem:[%s7 + $0x10] sm:$0xff]
    %v445 = vld [vmem:[%s7 + $0x18] sm:$0xff]
    %v447 = vsel %vm325, %v440, 0
    %v450 = vsel %vm325, %v441, 0
    %452 = vmatprep.subr.mxu0 0.0
    %453 = vmatpush1.msra.mxu0 0.0
    %454 = vmatprep.subr.mxu0 0.0
    %455 = vmatpush1.msra.mxu0 0.0
    %456 = vmatprep.subr.mxu0 0.0
    %457 = vmatpush1.msra.mxu0 0.0
    %458 = vmatprep.subr.mxu0 0.0
    %459 = vmatpush1.msra.mxu0 0.0
    %460 = vmatprep.subr.mxu0 0.0
    %461 = vmatpush1.msra.mxu0 0.0
    %462 = vmatprep.subr.mxu0 0.0
    %463 = vmatpush1.msra.mxu0 0.0
    %464 = vmatprep.subr.mxu0 0.0
    %465 = vmatpush1.msra.mxu0 0.0
    %466 = vmatprep.subr.mxu0 0.0
    %467 = vmatpush1.msra.mxu0 0.0
    %468 = vmatprep.subr.mxu0 0.0
    %469 = vmatpush1.msra.mxu0 0.0
    %470 = vmatprep.subr.mxu0 0.0
    %471 = vmatpush1.msra.mxu0 0.0
    %472 = vmatprep.subr.mxu0 0.0
    %473 = vmatpush1.msra.mxu0 0.0
    %474 = vmatprep.subr.mxu0 0.0
    %475 = vmatpush1.msra.mxu0 0.0
    %476 = vmatprep.subr.mxu0 0.0
    %477 = vmatpush1.msra.mxu0 %v445
    %478 = vmatprep.subr.mxu0 0.0
    %479 = vmatpush1.msra.mxu0 %v444
    %480 = vmatprep.subr.mxu0 0.0
    %481 = vmatpush1.msra.mxu0 %v443
    %482 = vmatprep.subr.mxu0 0.0
    %483 = vmatpush1.msra.mxu0 %v442
    %484 = vmatprep.subr.mxu0 0.0
    %485 = vmatpush2.msra.mxu0 0.0
    %486 = vmatprep.subr.mxu0 0.0
    %487 = vmatpush2.msra.mxu0 0.0
    %488 = vmatprep.subr.mxu0 0.0
    %489 = vmatpush2.msra.mxu0 0.0
    %490 = vmatprep.subr.mxu0 0.0
    %491 = vmatpush2.msra.mxu0 0.0
    %492 = vmatprep.subr.mxu0 0.0
    %493 = vmatpush2.msra.mxu0 0.0
    %494 = vmatprep.subr.mxu0 0.0
    %495 = vmatpush2.msra.mxu0 0.0
    %496 = vmatprep.subr.mxu0 0.0
    %497 = vmatpush2.msra.mxu0 0.0
    %498 = vmatprep.subr.mxu0 0.0
    %499 = vmatpush2.msra.mxu0 0.0
    %500 = vmatprep.subr.mxu0 0.0
    %501 = vmatpush2.msra.mxu0 0.0
    %502 = vmatprep.subr.mxu0 0.0
    %503 = vmatpush2.msra.mxu0 0.0
    %504 = vmatprep.subr.mxu0 0.0
    %505 = vmatpush2.msra.mxu0 0.0
    %506 = vmatprep.subr.mxu0 0.0
    %507 = vmatpush2.msra.mxu0 0.0
    %508 = vmatprep.subr.mxu0 0.0
    %509 = vmatpush2.msra.mxu0 0.0
    %510 = vmatprep.subr.mxu0 0.0
    %511 = vmatpush2.msra.mxu0 0.0
    %512 = vmatprep.subr.mxu0 0.0
    %513 = vmatpush2.msra.mxu0 0.0
    %514 = vmatprep.subr.mxu0 0.0
    %515 = vmatpush2.msra.mxu0 0.0
    %516 = vmatprep.mubr.f32.mxu0 0.0
    %517 = vmatmul.mubr.f32.gmra.mxu0 %v447
    %v518 = vpop.f32.mrf.mxu0
    %v519 = vadd.f32 0.0, %v518
    %v520 = vpop.f32.mrf.mxu0
    %521 = vmatprep.mubr.f32.mxu0 0.0
    %522 = vmatmul.mubr.f32.gmra.mxu0 %v450
    %v523 = vpop.f32.mrf.mxu0
    %v524 = vadd.f32 0.0, %v523
    %v525 = vpop.f32.mrf.mxu0
    %526 = vdwg.mxu0
    %v527 = vld [vmem:[%s10] sm:$0x3]
    %v529 = vsel %vm51, %v527, 0
    %531 = vmatprep.subr.mxu0 0.0
    %532 = vmatpush1.msra.mxu0 0.0
    %533 = vmatprep.subr.mxu0 0.0
    %534 = vmatpush1.msra.mxu0 0.0
    %535 = vmatprep.subr.mxu0 0.0
    %536 = vmatpush1.msra.mxu0 0.0
    %537 = vmatprep.subr.mxu0 0.0
    %538 = vmatpush1.msra.mxu0 0.0
    %539 = vmatprep.subr.mxu0 0.0
    %540 = vmatpush1.msra.mxu0 0.0
    %541 = vmatprep.subr.mxu0 0.0
    %542 = vmatpush1.msra.mxu0 0.0
    %543 = vmatprep.subr.mxu0 0.0
    %544 = vmatpush1.msra.mxu0 0.0
    %545 = vmatprep.subr.mxu0 0.0
    %546 = vmatpush1.msra.mxu0 0.0
    %547 = vmatprep.subr.mxu0 0.0
    %548 = vmatpush1.msra.mxu0 0.0
    %549 = vmatprep.subr.mxu0 0.0
    %550 = vmatpush1.msra.mxu0 0.0
    %551 = vmatprep.subr.mxu0 0.0
    %552 = vmatpush1.msra.mxu0 0.0
    %553 = vmatprep.subr.mxu0 0.0
    %554 = vmatpush1.msra.mxu0 0.0
    %555 = vmatprep.subr.mxu0 0.0
    %556 = vmatpush1.msra.mxu0 0.0
    %557 = vmatprep.subr.mxu0 0.0
    %558 = vmatpush1.msra.mxu0 0.0
    %559 = vmatprep.subr.mxu0 0.0
    %560 = vmatpush1.msra.mxu0 %v524
    %561 = vmatprep.subr.mxu0 0.0
    %562 = vmatpush1.msra.mxu0 %v519
    %563 = vmatprep.subr.mxu0 0.0
    %564 = vmatpush2.msra.mxu0 0.0
    %565 = vmatprep.subr.mxu0 0.0
    %566 = vmatpush2.msra.mxu0 0.0
    %567 = vmatprep.subr.mxu0 0.0
    %568 = vmatpush2.msra.mxu0 0.0
    %569 = vmatprep.subr.mxu0 0.0
    %570 = vmatpush2.msra.mxu0 0.0
    %571 = vmatprep.subr.mxu0 0.0
    %572 = vmatpush2.msra.mxu0 0.0
    %573 = vmatprep.subr.mxu0 0.0
    %574 = vmatpush2.msra.mxu0 0.0
    %575 = vmatprep.subr.mxu0 0.0
    %576 = vmatpush2.msra.mxu0 0.0
    %577 = vmatprep.subr.mxu0 0.0
    %578 = vmatpush2.msra.mxu0 0.0
    %579 = vmatprep.subr.mxu0 0.0
    %580 = vmatpush2.msra.mxu0 0.0
    %581 = vmatprep.subr.mxu0 0.0
    %582 = vmatpush2.msra.mxu0 0.0
    %583 = vmatprep.subr.mxu0 0.0
    %584 = vmatpush2.msra.mxu0 0.0
    %585 = vmatprep.subr.mxu0 0.0
    %586 = vmatpush2.msra.mxu0 0.0
    %587 = vmatprep.subr.mxu0 0.0
    %588 = vmatpush2.msra.mxu0 0.0
    %589 = vmatprep.subr.mxu0 0.0
    %590 = vmatpush2.msra.mxu0 0.0
    %591 = vmatprep.subr.mxu0 0.0
    %592 = vmatpush2.msra.mxu0 0.0
    %593 = vmatprep.subr.mxu0 0.0
    %594 = vmatpush2.msra.mxu0 0.0
    %595 = vmatprep.mubr.f32.mxu0 0.0
    %596 = vmatmul.mubr.f32.gmra.mxu0 %v529
    %v597 = vpop.f32.mrf.mxu0
    %v598 = vadd.f32 0.0, %v597
    %v599 = vpop.f32.mrf.mxu0
    %600 = vdwg.mxu0
    %v601 = vmax.f32 %v598, 1e-24
    %v602 = vrsqrt.pop %v601
    %v604 = vsel %vm226, %v602, 0
    %606 = vmatprep.subr.mxu0 0.0
    %607 = vmatpush1.msra.mxu0 0.0
    %608 = vmatprep.subr.mxu0 0.0
    %609 = vmatpush1.msra.mxu0 0.0
    %610 = vmatprep.subr.mxu0 0.0
    %611 = vmatpush1.msra.mxu0 0.0
    %612 = vmatprep.subr.mxu0 0.0
    %613 = vmatpush1.msra.mxu0 0.0
    %614 = vmatprep.subr.mxu0 0.0
    %615 = vmatpush1.msra.mxu0 0.0
    %616 = vmatprep.subr.mxu0 0.0
    %617 = vmatpush1.msra.mxu0 0.0
    %618 = vmatprep.subr.mxu0 0.0
    %619 = vmatpush1.msra.mxu0 0.0
    %620 = vmatprep.subr.mxu0 0.0
    %621 = vmatpush1.msra.mxu0 0.0
    %622 = vmatprep.subr.mxu0 0.0
    %623 = vmatpush1.msra.mxu0 0.0
    %624 = vmatprep.subr.mxu0 0.0
    %625 = vmatpush1.msra.mxu0 0.0
    %626 = vmatprep.subr.mxu0 0.0
    %627 = vmatpush1.msra.mxu0 0.0
    %628 = vmatprep.subr.mxu0 0.0
    %629 = vmatpush1.msra.mxu0 0.0
    %630 = vmatprep.subr.mxu0 0.0
    %631 = vmatpush1.msra.mxu0 0.0
    %632 = vmatprep.subr.mxu0 0.0
    %633 = vmatpush1.msra.mxu0 0.0
    %634 = vmatprep.subr.mxu0 0.0
    %635 = vmatpush1.msra.mxu0 0.0
    %636 = vmatprep.subr.mxu0 0.0
    %637 = vmatpush1.msra.mxu0 %v604
    %638 = vmatprep.subr.mxu0 0.0
    %639 = vmatpush2.msra.mxu0 0.0
    %640 = vmatprep.subr.mxu0 0.0
    %641 = vmatpush2.msra.mxu0 0.0
    %642 = vmatprep.subr.mxu0 0.0
    %643 = vmatpush2.msra.mxu0 0.0
    %644 = vmatprep.subr.mxu0 0.0
    %645 = vmatpush2.msra.mxu0 0.0
    %646 = vmatprep.subr.mxu0 0.0
    %647 = vmatpush2.msra.mxu0 0.0
    %648 = vmatprep.subr.mxu0 0.0
    %649 = vmatpush2.msra.mxu0 0.0
    %650 = vmatprep.subr.mxu0 0.0
    %651 = vmatpush2.msra.mxu0 0.0
    %652 = vmatprep.subr.mxu0 0.0
    %653 = vmatpush2.msra.mxu0 0.0
    %654 = vmatprep.subr.mxu0 0.0
    %655 = vmatpush2.msra.mxu0 0.0
    %656 = vmatprep.subr.mxu0 0.0
    %657 = vmatpush2.msra.mxu0 0.0
    %658 = vmatprep.subr.mxu0 0.0
    %659 = vmatpush2.msra.mxu0 0.0
    %660 = vmatprep.subr.mxu0 0.0
    %661 = vmatpush2.msra.mxu0 0.0
    %662 = vmatprep.subr.mxu0 0.0
    %663 = vmatpush2.msra.mxu0 0.0
    %664 = vmatprep.subr.mxu0 0.0
    %665 = vmatpush2.msra.mxu0 0.0
    %666 = vmatprep.subr.mxu0 0.0
    %667 = vmatpush2.msra.mxu0 0.0
    %668 = vmatprep.subr.mxu0 0.0
    %669 = vmatpush2.msra.mxu0 0.0
    %670 = vmatprep.mubr.f32.mxu0 0.0
    %671 = vmatmul.mubr.f32.gmra.mxu0 %v221
    %v672 = vpop.f32.mrf.mxu0
    %v673 = vadd.f32 0.0, %v672
    %v674 = vpop.f32.mrf.mxu0
    %675 = vmatprep.mubr.f32.mxu0 0.0
    %676 = vmatmul.mubr.f32.gmra.mxu0 %v224
    %v677 = vpop.f32.mrf.mxu0
    %v678 = vadd.f32 0.0, %v677
    %v679 = vpop.f32.mrf.mxu0
    %680 = vdwg.mxu0
    %v681 = vld [vmem:[%s8] sm:$0x3]
    %v683 = vsel %vm219, %v673, 0
    %v686 = vsel %vm219, %v678, 0
    %v689 = vsel %vm226, %v681, 0
    %691 = vmatprep.subr.mxu0 0.0
    %692 = vmatpush1.msra.mxu0 0.0
    %693 = vmatprep.subr.mxu0 0.0
    %694 = vmatpush1.msra.mxu0 0.0
    %695 = vmatprep.subr.mxu0 0.0
    %696 = vmatpush1.msra.mxu0 0.0
    %697 = vmatprep.subr.mxu0 0.0
    %698 = vmatpush1.msra.mxu0 0.0
    %699 = vmatprep.subr.mxu0 0.0
    %700 = vmatpush1.msra.mxu0 0.0
    %701 = vmatprep.subr.mxu0 0.0
    %702 = vmatpush1.msra.mxu0 0.0
    %703 = vmatprep.subr.mxu0 0.0
    %704 = vmatpush1.msra.mxu0 0.0
    %705 = vmatprep.subr.mxu0 0.0
    %706 = vmatpush1.msra.mxu0 0.0
    %707 = vmatprep.subr.mxu0 0.0
    %708 = vmatpush1.msra.mxu0 0.0
    %709 = vmatprep.subr.mxu0 0.0
    %710 = vmatpush1.msra.mxu0 0.0
    %711 = vmatprep.subr.mxu0 0.0
    %712 = vmatpush1.msra.mxu0 0.0
    %713 = vmatprep.subr.mxu0 0.0
    %714 = vmatpush1.msra.mxu0 0.0
    %715 = vmatprep.subr.mxu0 0.0
    %716 = vmatpush1.msra.mxu0 0.0
    %717 = vmatprep.subr.mxu0 0.0
    %718 = vmatpush1.msra.mxu0 0.0
    %719 = vmatprep.subr.mxu0 0.0
    %720 = vmatpush1.msra.mxu0 0.0
    %721 = vmatprep.subr.mxu0 0.0
    %722 = vmatpush1.msra.mxu0 %v689
    %723 = vmatprep.subr.mxu0 0.0
    %724 = vmatpush2.msra.mxu0 0.0
    %725 = vmatprep.subr.mxu0 0.0
    %726 = vmatpush2.msra.mxu0 0.0
    %727 = vmatprep.subr.mxu0 0.0
    %728 = vmatpush2.msra.mxu0 0.0
    %729 = vmatprep.subr.mxu0 0.0
    %730 = vmatpush2.msra.mxu0 0.0
    %731 = vmatprep.subr.mxu0 0.0
    %732 = vmatpush2.msra.mxu0 0.0
    %733 = vmatprep.subr.mxu0 0.0
    %734 = vmatpush2.msra.mxu0 0.0
    %735 = vmatprep.subr.mxu0 0.0
    %736 = vmatpush2.msra.mxu0 0.0
    %737 = vmatprep.subr.mxu0 0.0
    %738 = vmatpush2.msra.mxu0 0.0
    %739 = vmatprep.subr.mxu0 0.0
    %740 = vmatpush2.msra.mxu0 0.0
    %741 = vmatprep.subr.mxu0 0.0
    %742 = vmatpush2.msra.mxu0 0.0
    %743 = vmatprep.subr.mxu0 0.0
    %744 = vmatpush2.msra.mxu0 0.0
    %745 = vmatprep.subr.mxu0 0.0
    %746 = vmatpush2.msra.mxu0 0.0
    %747 = vmatprep.subr.mxu0 0.0
    %748 = vmatpush2.msra.mxu0 0.0
    %749 = vmatprep.subr.mxu0 0.0
    %750 = vmatpush2.msra.mxu0 0.0
    %751 = vmatprep.subr.mxu0 0.0
    %752 = vmatpush2.msra.mxu0 0.0
    %753 = vmatprep.subr.mxu0 0.0
    %754 = vmatpush2.msra.mxu0 0.0
    %755 = vmatprep.mubr.f32.mxu0 0.0
    %756 = vmatmul.mubr.f32.gmra.mxu0 %v683
    %v757 = vpop.f32.mrf.mxu0
    %v758 = vadd.f32 0.0, %v757
    %v759 = vpop.f32.mrf.mxu0
    %760 = vmatprep.mubr.f32.mxu0 0.0
    %761 = vmatmul.mubr.f32.gmra.mxu0 %v686
    %v762 = vpop.f32.mrf.mxu0
    %v763 = vadd.f32 0.0, %v762
    %v764 = vpop.f32.mrf.mxu0
    %765 = vdwg.mxu0
    %v766 = vmul.f32 %v438, %v758
    %v767 = vmul.f32 %v439, %v763
    %768 = vst.msk [vmem:[#allocation2] sm:$0xff] %vm325, %v766
    %769 = vst.msk [vmem:[#allocation2 + $0x8] sm:$0xff] %vm325, %v767
    // Predicated region
    $region46: #{tpu_custom_call.1} parent=1 // pred_check
      _
    $region47: #{tpu_custom_call.1} parent=1 // pred_check_branch
      %771 = sbr.rel (0) target = $region49
    $region48: #{tpu_custom_call.1} parent=1 // pred_region
      %s773 = ssub.s32 256, 256
      %774 = vsyncadd [#allocation3], %s773
      %s775 = sshll.u32 [#allocation2], 4
      %s776 = int_to_ptr.vmem [resolvable:$true] %s775
      %781 = dma.vmem_to_hbm [thread:$0]  %s776, 256, %s11, [#allocation3], 128, 128, 8
    $region49: #{tpu_custom_call.1} parent=1 // pred_fallthru
      _
    // Predicated region
    $region50: #{tpu_custom_call.1} parent=1 // pred_check
      _
    $region51: #{tpu_custom_call.1} parent=1 // pred_check_branch
      %783 = sbr.rel (0) target = $region53
    $region52: #{tpu_custom_call.1} parent=1 // pred_region
      %784 = dma.done [#allocation3], 256
    $region53: #{tpu_custom_call.1} parent=1 // pred_fallthru
      _
    %785 = vsyncpa [#allocation3], 1

</llo_original>
